<compile_context>
chip_gen: v7x
topology: tpu7x:2x2x1
jax: 0.10.0
libtpu: 0.0.40
codegen_flags: <defaults>
</compile_context>

<pallas_src>
import jax
import jax.numpy as jnp
from jax.experimental import pallas as pl
from jax.experimental.pallas import tpu as pltpu


def _round_up(x, m):
    return ((x + m - 1) // m) * m


def _make_hgcan_kernel(tb, S, E, A, P):
    AE = A * E

    def kernel(x_ref, wa_ref, ba_ref, wg_ref, bg_ref, out_ref):
        # x_ref:  (tb*S, E)  flat block of batch elements (lane dim = E)
        # wa_ref: (E, A)     attention weight (transposed)
        # ba_ref: (1, A)     attention bias
        # wg_ref: (E, E)     graph-conv weight (transposed)
        # bg_ref: (1, P)     graph-conv bias tiled A times (+ zero pad to P)
        # out_ref:(tb, P)    lane-dense flattened output, P = round_up(A*E,128)
        x2 = x_ref[...]                                        # (tb*S, E)

        # Attention projection fused across the batch block: (tb*S,E)@(E,A).
        logits = jnp.dot(x2, wa_ref[...],
                         preferred_element_type=jnp.float32) + ba_ref[...]

        # Softmax over the attention dim, in f32 (EUP approximate reciprocal).
        m = jnp.max(logits, axis=-1, keepdims=True)
        e = jnp.exp(logits - m)
        scores = e * pl.reciprocal(jnp.sum(e, axis=-1, keepdims=True),
                                   approx=True)                # (tb*S, A) f32

        # Segmented-sum view.  NOTE: this reshape is a free relayout only when
        # S % 8 == 0; for other S it materializes a per-step VMEM copy
        # (correctness unaffected, perf only).
        x3 = x2.astype(jnp.float32).reshape(tb, S, E)          # (tb, S, E)
        s3 = scores.reshape(tb, S, A)                          # (tb, S, A)

        # scores^T @ x, unrolled over the tiny attention dim so the contraction
        # over S stays on the VPU/XLU (broadcast-multiply + sublane reduce)
        # instead of tb tiny per-batch MXU matmuls; each head then gets a
        # well-filled (tb, E) @ (E, E) graph-conv matmul on the MXU.
        parts = []
        for a in range(A):
            agg_a = jnp.sum(s3[:, :, a:a + 1] * x3, axis=1)    # (tb, E) f32
            parts.append(jnp.dot(agg_a, wg_ref[...],
                                 preferred_element_type=jnp.float32))
        if P > AE:
            parts.append(jnp.zeros((tb, P - AE), jnp.float32))
        out = jnp.concatenate(parts, axis=-1) + bg_ref[...]    # (tb, P)

        out_ref[...] = out.astype(out_ref.dtype)               # full-width vst

    return kernel


def _choose_tb(B, S, E, P):
    """Batch-block size sized for the HBM roofline / per-step overhead, capped
    by a conservative per-step VMEM estimate (narrow E is lane-padded to 128 in
    VMEM, inflating the x block and f32 intermediates by 128/E)."""
    lanes_e = _round_up(E, 128)
    in_row = S * E * 4                       # logical x bytes per batch element
    in_row_pad = S * lanes_e * 4             # lane-padded VMEM bytes
    out_row = P * 4
    # 2x double-buffered input + ~4x input worth of f32 intermediates
    # + 2x double-buffered output + output-sized temporaries.
    per_row_vmem = 6 * in_row_pad + 4 * out_row
    vmem_budget = 36 << 20                   # fits v7x's 64 MiB/TC with margin
    dma_target = 4 << 20                     # target logical x bytes per step
    tb = min(vmem_budget // per_row_vmem, dma_target // in_row)
    tb = max(8, (tb // 8) * 8)
    if tb >= B:
        if B >= 16:
            # Keep >=2 grid steps so v7x's two TensorCores both get work.
            tb = max(8, _round_up((B + 1) // 2, 8))
        else:
            tb = B                           # single step: block == full batch
    return tb, per_row_vmem


def hgcan_forward(x, w_att, b_att, w_gc, b_gc):
    """x: (B, S, E); w_att: (A, E); b_att: (A,); w_gc: (E, E); b_gc: (E,)."""
    B, S, E = x.shape
    A = w_att.shape[0]
    P = _round_up(A * E, 128)                # lane-dense output width

    tb, per_row_vmem = _choose_tb(B, S, E, P)
    Bp = _round_up(B, tb)
    n_steps = Bp // tb

    # Flatten batch*seq in the wrapper (free, contiguous in HBM); pad whole
    # batch elements.  Padded rows see softmax(bias) -> finite garbage that is
    # sliced off below.
    x2 = x.reshape(B * S, E)
    if Bp != B:
        x2 = jnp.pad(x2, ((0, (Bp - B) * S), (0, 0)))

    wa_t = w_att.T                                    # (E, A)
    wg_t = w_gc.T                                     # (E, E)
    ba2 = b_att.reshape(1, A)
    bg_tile = jnp.tile(b_gc, A)                       # index a*E+e -> b_gc[e]
    if P > A * E:
        bg_tile = jnp.pad(bg_tile, (0, P - A * E))
    bg2 = bg_tile.reshape(1, P)

    kernel = _make_hgcan_kernel(tb, S, E, A, P)

    # Advisory cost estimate for XLA's scheduler.
    flops = 2 * B * S * E * A + 2 * B * S * A * E + 2 * B * A * E * E
    bytes_accessed = 4 * (B * S * E + B * A * E + E * A + A + E * E + E)
    cost = pl.CostEstimate(flops=int(flops),
                           transcendentals=int(B * S * A),
                           bytes_accessed=int(bytes_accessed))

    # Raise the scoped VMEM limit for multi-MiB blocks (defaults: 16 MiB v5e,
    # 32 MiB v6e/v7x); cap at 48 MiB so the same tiling also fits v7x.
    vmem_limit = int(min(48 << 20, max(32 << 20, tb * per_row_vmem + (4 << 20))))

    out_flat = pl.pallas_call(
        kernel,
        out_shape=jax.ShapeDtypeStruct((Bp, P), x.dtype),
        grid_spec=pltpu.PrefetchScalarGridSpec(
            num_scalar_prefetch=0,
            grid=(n_steps,),
            in_specs=[
                # If xprof ever shows exposed DMA on v7x, sweep
                # pipeline_mode=pl.Buffered(3) on this x BlockSpec.
                pl.BlockSpec((tb * S, E), lambda b: (b, 0)),
                pl.BlockSpec((E, A), lambda b: (0, 0)),
                pl.BlockSpec((1, A), lambda b: (0, 0)),
                pl.BlockSpec((E, E), lambda b: (0, 0)),
                pl.BlockSpec((1, P), lambda b: (0, 0)),
            ],
            out_specs=pl.BlockSpec((tb, P), lambda b: (b, 0)),
        ),
        compiler_params=pltpu.CompilerParams(
            dimension_semantics=("parallel",),
            vmem_limit_bytes=vmem_limit,
        ),
        cost_estimate=cost,
    )(x2, wa_t, ba2, wg_t, bg2)

    out = out_flat[:B, :A * E].reshape(B, A, E)

    # Mirror torch's .squeeze(1): only drops dim 1 when attention_size == 1.
    if A == 1:
        out = out[:, 0, :]
    return out


def hgcan_reference(x, w_att, b_att, w_gc, b_gc):
    logits = jnp.einsum("bse,ae->bsa", x, w_att) + b_att
    scores = jax.nn.softmax(logits, axis=-1)
    agg = jnp.einsum("bsa,bse->bae", scores, x)
    out = jnp.einsum("bae,fe->baf", agg, w_gc) + b_gc
    if w_att.shape[0] == 1:
        out = out[:, 0, :]
    return out


if __name__ == "__main__":
    # Small shapes consistent with the module's forward.
    B, S, E, A = 2, 8, 32, 4   # batch, seq_len, embed_size, attention_size

    key = jax.random.PRNGKey(0)
    kx, kwa, kba, kwg, kbg = jax.random.split(key, 5)

    x = jax.random.normal(kx, (B, S, E), dtype=jnp.float32)
    # Deterministic "Linear"-style init (uniform in +/- 1/sqrt(fan_in)).
    bound_a = 1.0 / (E ** 0.5)
    w_att = jax.random.uniform(kwa, (A, E), minval=-bound_a, maxval=bound_a, dtype=jnp.float32)
    b_att = jax.random.uniform(kba, (A,), minval=-bound_a, maxval=bound_a, dtype=jnp.float32)
    w_gc = jax.random.uniform(kwg, (E, E), minval=-bound_a, maxval=bound_a, dtype=jnp.float32)
    b_gc = jax.random.uniform(kbg, (E,), minval=-bound_a, maxval=bound_a, dtype=jnp.float32)

    out = hgcan_forward(x, w_att, b_att, w_gc, b_gc)
    out = jax.block_until_ready(out)

    ref = hgcan_reference(x, w_att, b_att, w_gc, b_gc)
    assert out.shape == ref.shape, (out.shape, ref.shape)
    # Tolerance slightly loosened vs the pure-f32 reference because the softmax
    # denominator uses the EUP approximate reciprocal (pl.reciprocal(approx=True)).
    assert jnp.allclose(out, ref, atol=5e-3, rtol=5e-3), "mismatch vs reference"

    print("KERNEL_OK")
</pallas_src>

<mosaic_0001>
module attributes {stable_mosaic.version = 11 : i64} {
  func.func @kernel(%arg0: i32, %arg1: memref<16x32xf32, #tpu.memory_space<vmem>>, %arg2: memref<32x4xf32, #tpu.memory_space<vmem>>, %arg3: memref<1x4xf32, #tpu.memory_space<vmem>>, %arg4: memref<32x32xf32, #tpu.memory_space<vmem>>, %arg5: memref<1x128xf32, #tpu.memory_space<vmem>>, %arg6: memref<2x128xf32, #tpu.memory_space<vmem>>) attributes {dimension_semantics = [#tpu.dimension_semantics<parallel>], iteration_bounds = array<i64: 1>, scalar_prefetch = 0 : i64, scratch_operands = 0 : i64, tpu.core_type = #tpu.core_type<tc>, window_params = [{transform_indices = @transform_0, window_bounds = array<i64: 16, 32>}, {pipeline_mode = #tpu.pipeline_mode<synchronous>, transform_indices = @transform_1, window_bounds = array<i64: 32, 4>}, {pipeline_mode = #tpu.pipeline_mode<synchronous>, transform_indices = @transform_2, window_bounds = array<i64: 1, 4>}, {pipeline_mode = #tpu.pipeline_mode<synchronous>, transform_indices = @transform_3, window_bounds = array<i64: 32, 32>}, {pipeline_mode = #tpu.pipeline_mode<synchronous>, transform_indices = @transform_4, window_bounds = array<i64: 1, 128>}, {transform_indices = @transform_5, window_bounds = array<i64: 2, 128>}]} {
    %c0 = arith.constant 0 : index
    %c0_0 = arith.constant 0 : index
    %0 = vector.load %arg1[%c0, %c0_0] : memref<16x32xf32, #tpu.memory_space<vmem>>, vector<16x32xf32>
    %c0_1 = arith.constant 0 : index
    %c0_2 = arith.constant 0 : index
    %1 = vector.load %arg2[%c0_1, %c0_2] : memref<32x4xf32, #tpu.memory_space<vmem>>, vector<32x4xf32>
    %cst = arith.constant dense<0.000000e+00> : vector<16x4xf32>
    %2 = tpu.matmul %0, %1, %cst {dimension_numbers = #tpu.dot_dimension_numbers<[1], [0], [0], [1], [0, 0, 1, 1], [], []>} : vector<16x32xf32>, vector<32x4xf32>, vector<16x4xf32> -> vector<16x4xf32>
    %c0_3 = arith.constant 0 : index
    %c0_4 = arith.constant 0 : index
    %3 = vector.load %arg3[%c0_3, %c0_4] : memref<1x4xf32, #tpu.memory_space<vmem>>, vector<1x4xf32>
    %4 = vector.broadcast %3 : vector<1x4xf32> to vector<16x4xf32>
    %5 = arith.addf %2, %4 : vector<16x4xf32>
    %cst_5 = arith.constant dense<0xFF800000> : vector<16xf32>
    %6 = vector.multi_reduction <maximumf>, %5, %cst_5 [1] : vector<16x4xf32> to vector<16xf32>
    %7 = vector.shape_cast %6 : vector<16xf32> to vector<16x1xf32>
    %8 = vector.broadcast %7 : vector<16x1xf32> to vector<16x4xf32>
    %9 = arith.subf %5, %8 : vector<16x4xf32>
    %10 = math.exp %9 : vector<16x4xf32>
    %cst_6 = arith.constant dense<0.000000e+00> : vector<16xf32>
    %11 = vector.multi_reduction <add>, %10, %cst_6 [1] : vector<16x4xf32> to vector<16xf32>
    %12 = vector.shape_cast %11 : vector<16xf32> to vector<16x1xf32>
    %13 = tpu.reciprocal %12 {approx = true} : vector<16x1xf32> -> vector<16x1xf32>
    %14 = vector.broadcast %13 : vector<16x1xf32> to vector<16x4xf32>
    %15 = arith.mulf %10, %14 : vector<16x4xf32>
    %16 = vector.shape_cast %0 : vector<16x32xf32> to vector<2x8x32xf32>
    %17 = vector.shape_cast %15 : vector<16x4xf32> to vector<2x8x4xf32>
    %18 = vector.extract_strided_slice %17 {offsets = [0, 0, 0], sizes = [2, 8, 1], strides = [1, 1, 1]} : vector<2x8x4xf32> to vector<2x8x1xf32>
    %19 = vector.broadcast %18 : vector<2x8x1xf32> to vector<2x8x32xf32>
    %20 = arith.mulf %19, %16 : vector<2x8x32xf32>
    %cst_7 = arith.constant dense<0.000000e+00> : vector<2x32xf32>
    %21 = vector.multi_reduction <add>, %20, %cst_7 [1] : vector<2x8x32xf32> to vector<2x32xf32>
    %c0_8 = arith.constant 0 : index
    %c0_9 = arith.constant 0 : index
    %22 = vector.load %arg4[%c0_8, %c0_9] : memref<32x32xf32, #tpu.memory_space<vmem>>, vector<32x32xf32>
    %cst_10 = arith.constant dense<0.000000e+00> : vector<2x32xf32>
    %23 = tpu.matmul %21, %22, %cst_10 {dimension_numbers = #tpu.dot_dimension_numbers<[1], [0], [0], [1], [0, 0, 1, 1], [], []>} : vector<2x32xf32>, vector<32x32xf32>, vector<2x32xf32> -> vector<2x32xf32>
    %24 = vector.extract_strided_slice %17 {offsets = [0, 0, 1], sizes = [2, 8, 1], strides = [1, 1, 1]} : vector<2x8x4xf32> to vector<2x8x1xf32>
    %25 = vector.broadcast %24 : vector<2x8x1xf32> to vector<2x8x32xf32>
    %26 = arith.mulf %25, %16 : vector<2x8x32xf32>
    %cst_11 = arith.constant dense<0.000000e+00> : vector<2x32xf32>
    %27 = vector.multi_reduction <add>, %26, %cst_11 [1] : vector<2x8x32xf32> to vector<2x32xf32>
    %c0_12 = arith.constant 0 : index
    %c0_13 = arith.constant 0 : index
    %28 = vector.load %arg4[%c0_12, %c0_13] : memref<32x32xf32, #tpu.memory_space<vmem>>, vector<32x32xf32>
    %cst_14 = arith.constant dense<0.000000e+00> : vector<2x32xf32>
    %29 = tpu.matmul %27, %28, %cst_14 {dimension_numbers = #tpu.dot_dimension_numbers<[1], [0], [0], [1], [0, 0, 1, 1], [], []>} : vector<2x32xf32>, vector<32x32xf32>, vector<2x32xf32> -> vector<2x32xf32>
    %30 = vector.extract_strided_slice %17 {offsets = [0, 0, 2], sizes = [2, 8, 1], strides = [1, 1, 1]} : vector<2x8x4xf32> to vector<2x8x1xf32>
    %31 = vector.broadcast %30 : vector<2x8x1xf32> to vector<2x8x32xf32>
    %32 = arith.mulf %31, %16 : vector<2x8x32xf32>
    %cst_15 = arith.constant dense<0.000000e+00> : vector<2x32xf32>
    %33 = vector.multi_reduction <add>, %32, %cst_15 [1] : vector<2x8x32xf32> to vector<2x32xf32>
    %c0_16 = arith.constant 0 : index
    %c0_17 = arith.constant 0 : index
    %34 = vector.load %arg4[%c0_16, %c0_17] : memref<32x32xf32, #tpu.memory_space<vmem>>, vector<32x32xf32>
    %cst_18 = arith.constant dense<0.000000e+00> : vector<2x32xf32>
    %35 = tpu.matmul %33, %34, %cst_18 {dimension_numbers = #tpu.dot_dimension_numbers<[1], [0], [0], [1], [0, 0, 1, 1], [], []>} : vector<2x32xf32>, vector<32x32xf32>, vector<2x32xf32> -> vector<2x32xf32>
    %36 = vector.extract_strided_slice %17 {offsets = [0, 0, 3], sizes = [2, 8, 1], strides = [1, 1, 1]} : vector<2x8x4xf32> to vector<2x8x1xf32>
    %37 = vector.broadcast %36 : vector<2x8x1xf32> to vector<2x8x32xf32>
    %38 = arith.mulf %37, %16 : vector<2x8x32xf32>
    %cst_19 = arith.constant dense<0.000000e+00> : vector<2x32xf32>
    %39 = vector.multi_reduction <add>, %38, %cst_19 [1] : vector<2x8x32xf32> to vector<2x32xf32>
    %c0_20 = arith.constant 0 : index
    %c0_21 = arith.constant 0 : index
    %40 = vector.load %arg4[%c0_20, %c0_21] : memref<32x32xf32, #tpu.memory_space<vmem>>, vector<32x32xf32>
    %cst_22 = arith.constant dense<0.000000e+00> : vector<2x32xf32>
    %41 = tpu.matmul %39, %40, %cst_22 {dimension_numbers = #tpu.dot_dimension_numbers<[1], [0], [0], [1], [0, 0, 1, 1], [], []>} : vector<2x32xf32>, vector<32x32xf32>, vector<2x32xf32> -> vector<2x32xf32>
    %42 = tpu.concatenate %23, %29, %35, %41 in 1 : vector<2x32xf32>, vector<2x32xf32>, vector<2x32xf32>, vector<2x32xf32> -> vector<2x128xf32>
    %c0_23 = arith.constant 0 : index
    %c0_24 = arith.constant 0 : index
    %43 = vector.load %arg5[%c0_23, %c0_24] : memref<1x128xf32, #tpu.memory_space<vmem>>, vector<1x128xf32>
    %44 = vector.broadcast %43 : vector<1x128xf32> to vector<2x128xf32>
    %45 = arith.addf %42, %44 : vector<2x128xf32>
    %c0_25 = arith.constant 0 : index
    %c0_26 = arith.constant 0 : index
    %46 = vector.load %arg6[%c0_25, %c0_26] : memref<2x128xf32, #tpu.memory_space<vmem>>, vector<2x128xf32>
    tpu.vector_store %arg6[%c0_25, %c0_26], %45 {strides = array<i32>} : memref<2x128xf32, #tpu.memory_space<vmem>>, vector<2x128xf32>,
    return
  }
  func.func @transform_0(%arg0: i32) -> (i32, i32) {
    %c0_i32 = arith.constant 0 : i32
    %c0_i32_0 = arith.constant 0 : i32
    return %arg0, %c0_i32 : i32, i32
  }
  func.func @transform_1(%arg0: i32) -> (i32, i32) {
    %c0_i32 = arith.constant 0 : i32
    %c0_i32_0 = arith.constant 0 : i32
    %c0_i32_1 = arith.constant 0 : i32
    return %c0_i32, %c0_i32_0 : i32, i32
  }
  func.func @transform_2(%arg0: i32) -> (i32, i32) {
    %c0_i32 = arith.constant 0 : i32
    %c0_i32_0 = arith.constant 0 : i32
    %c0_i32_1 = arith.constant 0 : i32
    return %c0_i32, %c0_i32_0 : i32, i32
  }
  func.func @transform_3(%arg0: i32) -> (i32, i32) {
    %c0_i32 = arith.constant 0 : i32
    %c0_i32_0 = arith.constant 0 : i32
    %c0_i32_1 = arith.constant 0 : i32
    return %c0_i32, %c0_i32_0 : i32, i32
  }
  func.func @transform_4(%arg0: i32) -> (i32, i32) {
    %c0_i32 = arith.constant 0 : i32
    %c0_i32_0 = arith.constant 0 : i32
    %c0_i32_1 = arith.constant 0 : i32
    return %c0_i32, %c0_i32_0 : i32, i32
  }
  func.func @transform_5(%arg0: i32) -> (i32, i32) {
    %c0_i32 = arith.constant 0 : i32
    %c0_i32_0 = arith.constant 0 : i32
    return %arg0, %c0_i32 : i32, i32
  }
}

</mosaic_0001>

<llo_original>
// kernel: tpu_custom_call.1
$region0: #{tpu_custom_call.1}
  #allocation0 [shape = 'u32[]', space=smem, size = 0x4, offset = 0x4, fixed_abs, tag = 'smem constant byte address 0x4 - core index']
  #allocation1 [shape = 'u32[144,128]{1,0:T(1,128)}', space=vmem, size = 0x12000, scoped, tag = 'internal scratch']
  %s0 = inlined_call_operand.hbm [shape: f32[16,32], index: 0, kind: input, shape index: {}]
  %s1 = inlined_call_operand.vmem [shape: f32[32,4], index: 1, kind: input, shape index: {}]
  %s2 = inlined_call_operand.vmem [shape: f32[1,4], index: 2, kind: input, shape index: {}]
  %s3 = inlined_call_operand.vmem [shape: f32[32,32], index: 3, kind: input, shape index: {}]
  %s4 = inlined_call_operand.vmem [shape: f32[1,128], index: 4, kind: input, shape index: {}]
  %s5 = inlined_call_operand.hbm [shape: f32[2,128], index: 5, kind: output, shape index: {}]
  %s6 = sld [smem:[#allocation0]]
  $region34: #{tpu_custom_call.1} parent=0
    _
  %s8 = ssub.s32 1, %s6
  %s9 = scalar_select 0, %s8, %s6
  $region1: #{tpu_custom_call.1} parent=0
    #allocation2 [shape = 'u8[8192]{0}', space=vmem, size = 0x2000, scoped, tag = 'input window, operand 0, single buffered']
    #allocation3 [shape = 's32[1]{0}', space=sflag, size = 0x4, scoped, tag = 'scoped memory for tpu_custom_call.1']
    #allocation4 [shape = 's32[1]{0}', space=sflag, size = 0x4, scoped, tag = 'scoped memory for tpu_custom_call.1']
    #allocation5 [shape = 'u8[1024]{0}', space=vmem, size = 0x400, scoped, tag = 'output window, operand 0, single buffered']
    %10 = vsyncpa [#allocation3], 0
    %11 = vsyncpa [#allocation4], 0
    // Predicated region
    $region2: #{tpu_custom_call.1} parent=1 // pred_check
      _
    $region3: #{tpu_custom_call.1} parent=1 // pred_check_branch
      %13 = sbr.rel (0) target = $region5
    $region4: #{tpu_custom_call.1} parent=1 // pred_region
      %s15 = ssub.s32 256, 256
      %16 = vsyncadd [#allocation3], %s15
      %s17 = sshll.u32 [#allocation2], 4
      %s18 = int_to_ptr.vmem [resolvable:$true] %s17
      %23 = dma.hbm_to_vmem [thread:$0]  %s0, 256, %s18, [#allocation3], 128, 128, 8
    $region5: #{tpu_custom_call.1} parent=1 // pred_fallthru
      _
    // Predicated region
    $region6: #{tpu_custom_call.1} parent=1 // pred_check
      _
    $region7: #{tpu_custom_call.1} parent=1 // pred_check_branch
      %25 = sbr.rel (0) target = $region9
    $region8: #{tpu_custom_call.1} parent=1 // pred_region
      _
    $region9: #{tpu_custom_call.1} parent=1 // pred_fallthru
      _
    // Predicated region
    $region10: #{tpu_custom_call.1} parent=1 // pred_check
      _
    $region11: #{tpu_custom_call.1} parent=1 // pred_check_branch
      %27 = sbr.rel (0) target = $region13
    $region12: #{tpu_custom_call.1} parent=1 // pred_region
      _
    $region13: #{tpu_custom_call.1} parent=1 // pred_fallthru
      _
    // Predicated region
    $region14: #{tpu_custom_call.1} parent=1 // pred_check
      _
    $region15: #{tpu_custom_call.1} parent=1 // pred_check_branch
      %29 = sbr.rel (0) target = $region17
    $region16: #{tpu_custom_call.1} parent=1 // pred_region
      _
    $region17: #{tpu_custom_call.1} parent=1 // pred_fallthru
      _
    // Predicated region
    $region18: #{tpu_custom_call.1} parent=1 // pred_check
      _
    $region19: #{tpu_custom_call.1} parent=1 // pred_check_branch
      %31 = sbr.rel (0) target = $region21
    $region20: #{tpu_custom_call.1} parent=1 // pred_region
      _
    $region21: #{tpu_custom_call.1} parent=1 // pred_fallthru
      _
    // Predicated region
    $region22: #{tpu_custom_call.1} parent=1 // pred_check
      _
    $region23: #{tpu_custom_call.1} parent=1 // pred_check_branch
      %33 = sbr.rel (0) target = $region25
    $region24: #{tpu_custom_call.1} parent=1 // pred_region
      %34 = dma.done [#allocation3], 256
    $region25: #{tpu_custom_call.1} parent=1 // pred_fallthru
      _
    %v35 = vld [vmem:[#allocation2] sm:$0xff]
    %v36 = vld [vmem:[#allocation2 + $0x8] sm:$0xff]
    %v37 = vld [vmem:[%s1] sm:$0xff]
    %v38 = vld [vmem:[%s1 + $0x8] sm:$0xff]
    %v39 = vld [vmem:[%s1 + $0x10] sm:$0xff]
    %v40 = vld [vmem:[%s1 + $0x18] sm:$0xff]
    %v41 = vld [vmem:[%s2] sm:$0x1]
    %v43 = vlaneseq
    %v44 = vshrl.u32 %v43, 7
    %v45 = vsub.s32 0, %v44
    %v46 = vrot.slane %v41, %v45
    %vm48 = vcmask 261120
    %v50 = vsel %vm48, %v35, 0
    %v53 = vsel %vm48, %v36, 0
    %55 = vmatprep.subr.mxu0 0.0
    %56 = vmatpush1.msra.mxu0 %v37
    %57 = vmatprep.subr.mxu0 0.0
    %58 = vmatpush1.msra.mxu0 %v38
    %59 = vmatprep.subr.mxu0 0.0
    %60 = vmatpush1.msra.mxu0 %v39
    %61 = vmatprep.subr.mxu0 0.0
    %62 = vmatpush1.msra.mxu0 %v40
    %63 = vmatprep.subr.mxu0 0.0
    %64 = vmatpush1.msra.mxu0 0.0
    %65 = vmatprep.subr.mxu0 0.0
    %66 = vmatpush1.msra.mxu0 0.0
    %67 = vmatprep.subr.mxu0 0.0
    %68 = vmatpush1.msra.mxu0 0.0
    %69 = vmatprep.subr.mxu0 0.0
    %70 = vmatpush1.msra.mxu0 0.0
    %71 = vmatprep.subr.mxu0 0.0
    %72 = vmatpush1.msra.mxu0 0.0
    %73 = vmatprep.subr.mxu0 0.0
    %74 = vmatpush1.msra.mxu0 0.0
    %75 = vmatprep.subr.mxu0 0.0
    %76 = vmatpush1.msra.mxu0 0.0
    %77 = vmatprep.subr.mxu0 0.0
    %78 = vmatpush1.msra.mxu0 0.0
    %79 = vmatprep.subr.mxu0 0.0
    %80 = vmatpush1.msra.mxu0 0.0
    %81 = vmatprep.subr.mxu0 0.0
    %82 = vmatpush1.msra.mxu0 0.0
    %83 = vmatprep.subr.mxu0 0.0
    %84 = vmatpush1.msra.mxu0 0.0
    %85 = vmatprep.subr.mxu0 0.0
    %86 = vmatpush1.msra.mxu0 0.0
    %87 = vmatprep.subr.mxu0 0.0
    %88 = vmatpush1.msra.mxu0 0.0
    %89 = vmatprep.subr.mxu0 0.0
    %90 = vmatpush1.msra.mxu0 0.0
    %91 = vmatprep.subr.mxu0 0.0
    %92 = vmatpush1.msra.mxu0 0.0
    %93 = vmatprep.subr.mxu0 0.0
    %94 = vmatpush1.msra.mxu0 0.0
    %95 = vmatprep.subr.mxu0 0.0
    %96 = vmatpush1.msra.mxu0 0.0
    %97 = vmatprep.subr.mxu0 0.0
    %98 = vmatpush1.msra.mxu0 0.0
    %99 = vmatprep.subr.mxu0 0.0
    %100 = vmatpush1.msra.mxu0 0.0
    %101 = vmatprep.subr.mxu0 0.0
    %102 = vmatpush1.msra.mxu0 0.0
    %103 = vmatprep.subr.mxu0 0.0
    %104 = vmatpush1.msra.mxu0 0.0
    %105 = vmatprep.subr.mxu0 0.0
    %106 = vmatpush1.msra.mxu0 0.0
    %107 = vmatprep.subr.mxu0 0.0
    %108 = vmatpush1.msra.mxu0 0.0
    %109 = vmatprep.subr.mxu0 0.0
    %110 = vmatpush1.msra.mxu0 0.0
    %111 = vmatprep.subr.mxu0 0.0
    %112 = vmatpush1.msra.mxu0 0.0
    %113 = vmatprep.subr.mxu0 0.0
    %114 = vmatpush1.msra.mxu0 0.0
    %115 = vmatprep.subr.mxu0 0.0
    %116 = vmatpush1.msra.mxu0 0.0
    %117 = vmatprep.subr.mxu0 0.0
    %118 = vmatpush1.msra.mxu0 0.0
    %119 = vmatprep.mubr.f32.mxu0 0.0
    %120 = vmatmul.mubr.f32.gmra.mrb[0].mxu0 %v50
    %v121 = vpop.f32.mrb[0].mxu0
    %v122 = vadd.f32 %v46, %v121
    %v123 = vpop.f32.mrb[0].mxu0
    %124 = vmatprep.mubr.f32.mxu0 0.0
    %125 = vmatmul.mubr.f32.gmra.mrb[0].mxu0 %v53
    %v126 = vpop.f32.mrb[0].mxu0
    %v127 = vadd.f32 %v46, %v126
    %v128 = vpop.f32.mrb[0].mxu0
    %129 = vdwg.mxu0
    %vm130 = vcmask 31744
    %v131 = vsel %vm130, %v122, -inf
    %132 = vmax.xlane.f32.xlu0 %v131
    %v133 = vpop.xlane.xlu0 %132
    %v134 = vsel %vm130, %v127, -inf
    %135 = vmax.xlane.f32.xlu0 %v134
    %v136 = vpop.xlane.xlu0 %135
    %v137 = vsub.f32 %v122, %v133
    %v138 = vsub.f32 %v127, %v136
    %v139 = vmul.f32 %v137, 1.442695
    %v140 = vpow.pop %v139
    %v141 = vmul.f32 %v138, 1.442695
    %v142 = vpow.pop %v141
    %v143 = vsel %vm130, %v140, 0.0
    %144 = vadd.xlane.f32.xlu0 %v143
    %v145 = vpop.xlane.xlu0 %144
    %v146 = vsel %vm130, %v142, 0.0
    %147 = vadd.xlane.f32.xlu0 %v146
    %v148 = vpop.xlane.xlu0 %147
    %v149 = vrcp.pop %v145
    %v150 = vrcp.pop %v148
    %v151 = vmul.f32 %v140, %v149
    %v152 = vmul.f32 %v142, %v150
    %154 = vset.pattern.permute.xlu0 0
    %155 = vperm.xlu0 %154, %v151
    %v156 = vpop.permute.xlu0 %155
    %159 = vset.pattern.permute.xlu0 0
    %160 = vperm.xlu0 %159, %v152
    %v161 = vpop.permute.xlu0 %160
    %v163 = vmul.f32 %v156, %v35
    %v164 = vmul.f32 %v161, %v36
    %v165 = vsel %vm48, %v163, 0.0
    %v166 = vrot.slane %v165, 4
    %v167 = vadd.f32 %v165, %v166
    %v168 = vrot.slane %v167, 2
    %v169 = vadd.f32 %v167, %v168
    %v170 = vrot.slane %v169, 1
    %v171 = vadd.f32 %v169, %v170
    %v172 = vsel %vm48, %v164, 0.0
    %v173 = vrot.slane %v172, 4
    %v174 = vadd.f32 %v172, %v173
    %v175 = vrot.slane %v174, 2
    %v176 = vadd.f32 %v174, %v175
    %v177 = vrot.slane %v176, 1
    %v178 = vadd.f32 %v176, %v177
    %v179 = vld [vmem:[%s3] sm:$0xff]
    %v180 = vld [vmem:[%s3 + $0x8] sm:$0xff]
    %v181 = vld [vmem:[%s3 + $0x10] sm:$0xff]
    %v182 = vld [vmem:[%s3 + $0x18] sm:$0xff]
    %vm185 = vcmask 1041409
    %v186 = vsel %vm185, %v178, %v171
    %v187 = vsel %vm48, %v186, 0
    %189 = vmatprep.subr.mxu0 0.0
    %190 = vmatpush1.msra.mxu0 %v179
    %191 = vmatprep.subr.mxu0 0.0
    %192 = vmatpush1.msra.mxu0 %v180
    %193 = vmatprep.subr.mxu0 0.0
    %194 = vmatpush1.msra.mxu0 %v181
    %195 = vmatprep.subr.mxu0 0.0
    %196 = vmatpush1.msra.mxu0 %v182
    %197 = vmatprep.subr.mxu0 0.0
    %198 = vmatpush1.msra.mxu0 0.0
    %199 = vmatprep.subr.mxu0 0.0
    %200 = vmatpush1.msra.mxu0 0.0
    %201 = vmatprep.subr.mxu0 0.0
    %202 = vmatpush1.msra.mxu0 0.0
    %203 = vmatprep.subr.mxu0 0.0
    %204 = vmatpush1.msra.mxu0 0.0
    %205 = vmatprep.subr.mxu0 0.0
    %206 = vmatpush1.msra.mxu0 0.0
    %207 = vmatprep.subr.mxu0 0.0
    %208 = vmatpush1.msra.mxu0 0.0
    %209 = vmatprep.subr.mxu0 0.0
    %210 = vmatpush1.msra.mxu0 0.0
    %211 = vmatprep.subr.mxu0 0.0
    %212 = vmatpush1.msra.mxu0 0.0
    %213 = vmatprep.subr.mxu0 0.0
    %214 = vmatpush1.msra.mxu0 0.0
    %215 = vmatprep.subr.mxu0 0.0
    %216 = vmatpush1.msra.mxu0 0.0
    %217 = vmatprep.subr.mxu0 0.0
    %218 = vmatpush1.msra.mxu0 0.0
    %219 = vmatprep.subr.mxu0 0.0
    %220 = vmatpush1.msra.mxu0 0.0
    %221 = vmatprep.subr.mxu0 0.0
    %222 = vmatpush1.msra.mxu0 0.0
    %223 = vmatprep.subr.mxu0 0.0
    %224 = vmatpush1.msra.mxu0 0.0
    %225 = vmatprep.subr.mxu0 0.0
    %226 = vmatpush1.msra.mxu0 0.0
    %227 = vmatprep.subr.mxu0 0.0
    %228 = vmatpush1.msra.mxu0 0.0
    %229 = vmatprep.subr.mxu0 0.0
    %230 = vmatpush1.msra.mxu0 0.0
    %231 = vmatprep.subr.mxu0 0.0
    %232 = vmatpush1.msra.mxu0 0.0
    %233 = vmatprep.subr.mxu0 0.0
    %234 = vmatpush1.msra.mxu0 0.0
    %235 = vmatprep.subr.mxu0 0.0
    %236 = vmatpush1.msra.mxu0 0.0
    %237 = vmatprep.subr.mxu0 0.0
    %238 = vmatpush1.msra.mxu0 0.0
    %239 = vmatprep.subr.mxu0 0.0
    %240 = vmatpush1.msra.mxu0 0.0
    %241 = vmatprep.subr.mxu0 0.0
    %242 = vmatpush1.msra.mxu0 0.0
    %243 = vmatprep.subr.mxu0 0.0
    %244 = vmatpush1.msra.mxu0 0.0
    %245 = vmatprep.subr.mxu0 0.0
    %246 = vmatpush1.msra.mxu0 0.0
    %247 = vmatprep.subr.mxu0 0.0
    %248 = vmatpush1.msra.mxu0 0.0
    %249 = vmatprep.subr.mxu0 0.0
    %250 = vmatpush1.msra.mxu0 0.0
    %251 = vmatprep.subr.mxu0 0.0
    %252 = vmatpush1.msra.mxu0 0.0
    %253 = vmatprep.mubr.f32.mxu0 0.0
    %254 = vmatmul.mubr.f32.gmra.mrb[0].mxu0 %v187
    %v255 = vpop.f32.mrb[0].mxu0
    %v256 = vadd.f32 0.0, %v255
    %v257 = vpop.f32.mrb[0].mxu0
    %258 = vdwg.mxu0
    %259 = vset.pattern.permute.xlu0 1
    %260 = vperm.xlu0 %259, %v151
    %v261 = vpop.permute.xlu0 %260
    %263 = vset.pattern.permute.xlu0 1
    %264 = vperm.xlu0 %263, %v152
    %v265 = vpop.permute.xlu0 %264
    %v267 = vmul.f32 %v261, %v35
    %v268 = vmul.f32 %v265, %v36
    %v269 = vsel %vm48, %v267, 0.0
    %v270 = vrot.slane %v269, 4
    %v271 = vadd.f32 %v269, %v270
    %v272 = vrot.slane %v271, 2
    %v273 = vadd.f32 %v271, %v272
    %v274 = vrot.slane %v273, 1
    %v275 = vadd.f32 %v273, %v274
    %v276 = vsel %vm48, %v268, 0.0
    %v277 = vrot.slane %v276, 4
    %v278 = vadd.f32 %v276, %v277
    %v279 = vrot.slane %v278, 2
    %v280 = vadd.f32 %v278, %v279
    %v281 = vrot.slane %v280, 1
    %v282 = vadd.f32 %v280, %v281
    %v285 = vsel %vm185, %v282, %v275
    %v286 = vsel %vm48, %v285, 0
    %288 = vmatprep.subr.mxu0 0.0
    %289 = vmatpush1.msra.mxu0 %v179
    %290 = vmatprep.subr.mxu0 0.0
    %291 = vmatpush1.msra.mxu0 %v180
    %292 = vmatprep.subr.mxu0 0.0
    %293 = vmatpush1.msra.mxu0 %v181
    %294 = vmatprep.subr.mxu0 0.0
    %295 = vmatpush1.msra.mxu0 %v182
    %296 = vmatprep.subr.mxu0 0.0
    %297 = vmatpush1.msra.mxu0 0.0
    %298 = vmatprep.subr.mxu0 0.0
    %299 = vmatpush1.msra.mxu0 0.0
    %300 = vmatprep.subr.mxu0 0.0
    %301 = vmatpush1.msra.mxu0 0.0
    %302 = vmatprep.subr.mxu0 0.0
    %303 = vmatpush1.msra.mxu0 0.0
    %304 = vmatprep.subr.mxu0 0.0
    %305 = vmatpush1.msra.mxu0 0.0
    %306 = vmatprep.subr.mxu0 0.0
    %307 = vmatpush1.msra.mxu0 0.0
    %308 = vmatprep.subr.mxu0 0.0
    %309 = vmatpush1.msra.mxu0 0.0
    %310 = vmatprep.subr.mxu0 0.0
    %311 = vmatpush1.msra.mxu0 0.0
    %312 = vmatprep.subr.mxu0 0.0
    %313 = vmatpush1.msra.mxu0 0.0
    %314 = vmatprep.subr.mxu0 0.0
    %315 = vmatpush1.msra.mxu0 0.0
    %316 = vmatprep.subr.mxu0 0.0
    %317 = vmatpush1.msra.mxu0 0.0
    %318 = vmatprep.subr.mxu0 0.0
    %319 = vmatpush1.msra.mxu0 0.0
    %320 = vmatprep.subr.mxu0 0.0
    %321 = vmatpush1.msra.mxu0 0.0
    %322 = vmatprep.subr.mxu0 0.0
    %323 = vmatpush1.msra.mxu0 0.0
    %324 = vmatprep.subr.mxu0 0.0
    %325 = vmatpush1.msra.mxu0 0.0
    %326 = vmatprep.subr.mxu0 0.0
    %327 = vmatpush1.msra.mxu0 0.0
    %328 = vmatprep.subr.mxu0 0.0
    %329 = vmatpush1.msra.mxu0 0.0
    %330 = vmatprep.subr.mxu0 0.0
    %331 = vmatpush1.msra.mxu0 0.0
    %332 = vmatprep.subr.mxu0 0.0
    %333 = vmatpush1.msra.mxu0 0.0
    %334 = vmatprep.subr.mxu0 0.0
    %335 = vmatpush1.msra.mxu0 0.0
    %336 = vmatprep.subr.mxu0 0.0
    %337 = vmatpush1.msra.mxu0 0.0
    %338 = vmatprep.subr.mxu0 0.0
    %339 = vmatpush1.msra.mxu0 0.0
    %340 = vmatprep.subr.mxu0 0.0
    %341 = vmatpush1.msra.mxu0 0.0
    %342 = vmatprep.subr.mxu0 0.0
    %343 = vmatpush1.msra.mxu0 0.0
    %344 = vmatprep.subr.mxu0 0.0
    %345 = vmatpush1.msra.mxu0 0.0
    %346 = vmatprep.subr.mxu0 0.0
    %347 = vmatpush1.msra.mxu0 0.0
    %348 = vmatprep.subr.mxu0 0.0
    %349 = vmatpush1.msra.mxu0 0.0
    %350 = vmatprep.subr.mxu0 0.0
    %351 = vmatpush1.msra.mxu0 0.0
    %352 = vmatprep.mubr.f32.mxu0 0.0
    %353 = vmatmul.mubr.f32.gmra.mrb[0].mxu0 %v286
    %v354 = vpop.f32.mrb[0].mxu0
    %v355 = vadd.f32 0.0, %v354
    %v356 = vpop.f32.mrb[0].mxu0
    %357 = vdwg.mxu0
    %358 = vset.pattern.permute.xlu0 2
    %359 = vperm.xlu0 %358, %v151
    %v360 = vpop.permute.xlu0 %359
    %362 = vset.pattern.permute.xlu0 2
    %363 = vperm.xlu0 %362, %v152
    %v364 = vpop.permute.xlu0 %363
    %v366 = vmul.f32 %v360, %v35
    %v367 = vmul.f32 %v364, %v36
    %v368 = vsel %vm48, %v366, 0.0
    %v369 = vrot.slane %v368, 4
    %v370 = vadd.f32 %v368, %v369
    %v371 = vrot.slane %v370, 2
    %v372 = vadd.f32 %v370, %v371
    %v373 = vrot.slane %v372, 1
    %v374 = vadd.f32 %v372, %v373
    %v375 = vsel %vm48, %v367, 0.0
    %v376 = vrot.slane %v375, 4
    %v377 = vadd.f32 %v375, %v376
    %v378 = vrot.slane %v377, 2
    %v379 = vadd.f32 %v377, %v378
    %v380 = vrot.slane %v379, 1
    %v381 = vadd.f32 %v379, %v380
    %v384 = vsel %vm185, %v381, %v374
    %v385 = vsel %vm48, %v384, 0
    %387 = vmatprep.subr.mxu0 0.0
    %388 = vmatpush1.msra.mxu0 %v179
    %389 = vmatprep.subr.mxu0 0.0
    %390 = vmatpush1.msra.mxu0 %v180
    %391 = vmatprep.subr.mxu0 0.0
    %392 = vmatpush1.msra.mxu0 %v181
    %393 = vmatprep.subr.mxu0 0.0
    %394 = vmatpush1.msra.mxu0 %v182
    %395 = vmatprep.subr.mxu0 0.0
    %396 = vmatpush1.msra.mxu0 0.0
    %397 = vmatprep.subr.mxu0 0.0
    %398 = vmatpush1.msra.mxu0 0.0
    %399 = vmatprep.subr.mxu0 0.0
    %400 = vmatpush1.msra.mxu0 0.0
    %401 = vmatprep.subr.mxu0 0.0
    %402 = vmatpush1.msra.mxu0 0.0
    %403 = vmatprep.subr.mxu0 0.0
    %404 = vmatpush1.msra.mxu0 0.0
    %405 = vmatprep.subr.mxu0 0.0
    %406 = vmatpush1.msra.mxu0 0.0
    %407 = vmatprep.subr.mxu0 0.0
    %408 = vmatpush1.msra.mxu0 0.0
    %409 = vmatprep.subr.mxu0 0.0
    %410 = vmatpush1.msra.mxu0 0.0
    %411 = vmatprep.subr.mxu0 0.0
    %412 = vmatpush1.msra.mxu0 0.0
    %413 = vmatprep.subr.mxu0 0.0
    %414 = vmatpush1.msra.mxu0 0.0
    %415 = vmatprep.subr.mxu0 0.0
    %416 = vmatpush1.msra.mxu0 0.0
    %417 = vmatprep.subr.mxu0 0.0
    %418 = vmatpush1.msra.mxu0 0.0
    %419 = vmatprep.subr.mxu0 0.0
    %420 = vmatpush1.msra.mxu0 0.0
    %421 = vmatprep.subr.mxu0 0.0
    %422 = vmatpush1.msra.mxu0 0.0
    %423 = vmatprep.subr.mxu0 0.0
    %424 = vmatpush1.msra.mxu0 0.0
    %425 = vmatprep.subr.mxu0 0.0
    %426 = vmatpush1.msra.mxu0 0.0
    %427 = vmatprep.subr.mxu0 0.0
    %428 = vmatpush1.msra.mxu0 0.0
    %429 = vmatprep.subr.mxu0 0.0
    %430 = vmatpush1.msra.mxu0 0.0
    %431 = vmatprep.subr.mxu0 0.0
    %432 = vmatpush1.msra.mxu0 0.0
    %433 = vmatprep.subr.mxu0 0.0
    %434 = vmatpush1.msra.mxu0 0.0
    %435 = vmatprep.subr.mxu0 0.0
    %436 = vmatpush1.msra.mxu0 0.0
    %437 = vmatprep.subr.mxu0 0.0
    %438 = vmatpush1.msra.mxu0 0.0
    %439 = vmatprep.subr.mxu0 0.0
    %440 = vmatpush1.msra.mxu0 0.0
    %441 = vmatprep.subr.mxu0 0.0
    %442 = vmatpush1.msra.mxu0 0.0
    %443 = vmatprep.subr.mxu0 0.0
    %444 = vmatpush1.msra.mxu0 0.0
    %445 = vmatprep.subr.mxu0 0.0
    %446 = vmatpush1.msra.mxu0 0.0
    %447 = vmatprep.subr.mxu0 0.0
    %448 = vmatpush1.msra.mxu0 0.0
    %449 = vmatprep.subr.mxu0 0.0
    %450 = vmatpush1.msra.mxu0 0.0
    %451 = vmatprep.mubr.f32.mxu0 0.0
    %452 = vmatmul.mubr.f32.gmra.mrb[0].mxu0 %v385
    %v453 = vpop.f32.mrb[0].mxu0
    %v454 = vadd.f32 0.0, %v453
    %v455 = vpop.f32.mrb[0].mxu0
    %456 = vdwg.mxu0
    %457 = vset.pattern.permute.xlu0 3
    %458 = vperm.xlu0 %457, %v151
    %v459 = vpop.permute.xlu0 %458
    %461 = vset.pattern.permute.xlu0 3
    %462 = vperm.xlu0 %461, %v152
    %v463 = vpop.permute.xlu0 %462
    %v465 = vmul.f32 %v459, %v35
    %v466 = vmul.f32 %v463, %v36
    %v467 = vsel %vm48, %v465, 0.0
    %v468 = vrot.slane %v467, 4
    %v469 = vadd.f32 %v467, %v468
    %v470 = vrot.slane %v469, 2
    %v471 = vadd.f32 %v469, %v470
    %v472 = vrot.slane %v471, 1
    %v473 = vadd.f32 %v471, %v472
    %v474 = vsel %vm48, %v466, 0.0
    %v475 = vrot.slane %v474, 4
    %v476 = vadd.f32 %v474, %v475
    %v477 = vrot.slane %v476, 2
    %v478 = vadd.f32 %v476, %v477
    %v479 = vrot.slane %v478, 1
    %v480 = vadd.f32 %v478, %v479
    %v483 = vsel %vm185, %v480, %v473
    %v484 = vsel %vm48, %v483, 0
    %486 = vmatprep.subr.mxu0 0.0
    %487 = vmatpush1.msra.mxu0 %v179
    %488 = vmatprep.subr.mxu0 0.0
    %489 = vmatpush1.msra.mxu0 %v180
    %490 = vmatprep.subr.mxu0 0.0
    %491 = vmatpush1.msra.mxu0 %v181
    %492 = vmatprep.subr.mxu0 0.0
    %493 = vmatpush1.msra.mxu0 %v182
    %494 = vmatprep.subr.mxu0 0.0
    %495 = vmatpush1.msra.mxu0 0.0
    %496 = vmatprep.subr.mxu0 0.0
    %497 = vmatpush1.msra.mxu0 0.0
    %498 = vmatprep.subr.mxu0 0.0
    %499 = vmatpush1.msra.mxu0 0.0
    %500 = vmatprep.subr.mxu0 0.0
    %501 = vmatpush1.msra.mxu0 0.0
    %502 = vmatprep.subr.mxu0 0.0
    %503 = vmatpush1.msra.mxu0 0.0
    %504 = vmatprep.subr.mxu0 0.0
    %505 = vmatpush1.msra.mxu0 0.0
    %506 = vmatprep.subr.mxu0 0.0
    %507 = vmatpush1.msra.mxu0 0.0
    %508 = vmatprep.subr.mxu0 0.0
    %509 = vmatpush1.msra.mxu0 0.0
    %510 = vmatprep.subr.mxu0 0.0
    %511 = vmatpush1.msra.mxu0 0.0
    %512 = vmatprep.subr.mxu0 0.0
    %513 = vmatpush1.msra.mxu0 0.0
    %514 = vmatprep.subr.mxu0 0.0
    %515 = vmatpush1.msra.mxu0 0.0
    %516 = vmatprep.subr.mxu0 0.0
    %517 = vmatpush1.msra.mxu0 0.0
    %518 = vmatprep.subr.mxu0 0.0
    %519 = vmatpush1.msra.mxu0 0.0
    %520 = vmatprep.subr.mxu0 0.0
    %521 = vmatpush1.msra.mxu0 0.0
    %522 = vmatprep.subr.mxu0 0.0
    %523 = vmatpush1.msra.mxu0 0.0
    %524 = vmatprep.subr.mxu0 0.0
    %525 = vmatpush1.msra.mxu0 0.0
    %526 = vmatprep.subr.mxu0 0.0
    %527 = vmatpush1.msra.mxu0 0.0
    %528 = vmatprep.subr.mxu0 0.0
    %529 = vmatpush1.msra.mxu0 0.0
    %530 = vmatprep.subr.mxu0 0.0
    %531 = vmatpush1.msra.mxu0 0.0
    %532 = vmatprep.subr.mxu0 0.0
    %533 = vmatpush1.msra.mxu0 0.0
    %534 = vmatprep.subr.mxu0 0.0
    %535 = vmatpush1.msra.mxu0 0.0
    %536 = vmatprep.subr.mxu0 0.0
    %537 = vmatpush1.msra.mxu0 0.0
    %538 = vmatprep.subr.mxu0 0.0
    %539 = vmatpush1.msra.mxu0 0.0
    %540 = vmatprep.subr.mxu0 0.0
    %541 = vmatpush1.msra.mxu0 0.0
    %542 = vmatprep.subr.mxu0 0.0
    %543 = vmatpush1.msra.mxu0 0.0
    %544 = vmatprep.subr.mxu0 0.0
    %545 = vmatpush1.msra.mxu0 0.0
    %546 = vmatprep.subr.mxu0 0.0
    %547 = vmatpush1.msra.mxu0 0.0
    %548 = vmatprep.subr.mxu0 0.0
    %549 = vmatpush1.msra.mxu0 0.0
    %550 = vmatprep.mubr.f32.mxu0 0.0
    %551 = vmatmul.mubr.f32.gmra.mrb[0].mxu0 %v484
    %v552 = vpop.f32.mrb[0].mxu0
    %v553 = vadd.f32 0.0, %v552
    %v554 = vpop.f32.mrb[0].mxu0
    %555 = vdwg.mxu0
    %557 = vrot.lane.b32.xlu0 %v355, 32
    %v558 = vpop.permute.xlu0 %557
    %561 = vrot.lane.b32.xlu0 %v454, 64
    %v562 = vpop.permute.xlu0 %561
    %565 = vrot.lane.b32.xlu0 %v553, 96
    %v566 = vpop.permute.xlu0 %565
    %v568 = vsel %vm48, %v256, %v558
    %vm569 = vcmask 523264
    %v570 = vsel %vm569, %v568, %v562
    %vm571 = vcmask 785408
    %v572 = vsel %vm571, %v570, %v566
    %v573 = vld [vmem:[%s4] sm:$0x1]
    %v575 = vlaneseq
    %v576 = vshrl.u32 %v575, 7
    %v577 = vsub.s32 0, %v576
    %v578 = vrot.slane %v573, %v577
    %v580 = vadd.f32 %v572, %v578
    %581 = vst [vmem:[#allocation5] sm:$0x3] %v580
    // Predicated region
    $region26: #{tpu_custom_call.1} parent=1 // pred_check
      _
    $region27: #{tpu_custom_call.1} parent=1 // pred_check_branch
      %583 = sbr.rel (0) target = $region29
    $region28: #{tpu_custom_call.1} parent=1 // pred_region
      %s585 = ssub.s32 32, 32
      %586 = vsyncadd [#allocation4], %s585
      %s588 = sshll.u32 [#allocation5], 4
      %s589 = int_to_ptr.vmem [resolvable:$true] %s588
      %591 = dma.vmem_to_hbm [thread:$0]  %s589, 32, %s5, [#allocation4]
    $region29: #{tpu_custom_call.1} parent=1 // pred_fallthru
      _
    // Predicated region
    $region30: #{tpu_custom_call.1} parent=1 // pred_check
      _
    $region31: #{tpu_custom_call.1} parent=1 // pred_check_branch
      %593 = sbr.rel (0) target = $region33
    $region32: #{tpu_custom_call.1} parent=1 // pred_region
      %594 = dma.done [#allocation4], 32
    $region33: #{tpu_custom_call.1} parent=1 // pred_fallthru
      _
    %595 = vsyncpa [#allocation3], 1
    %596 = vsyncpa [#allocation4], 1

</llo_original>
